<compile_context>
chip_gen: v6e
topology: v6e:2x2x1
jax: 0.10.0
libtpu: 0.0.40
codegen_flags: <defaults>
</compile_context>

<pallas_src>
import functools

import jax
import jax.numpy as jnp
from jax.experimental import pallas as pl
from jax.experimental.pallas import tpu as pltpu


# ----------------------------------------------------------------------------
# Pallas kernel: fused (upsample x) + split-weight 3x3 conv + bias + ReLU, per batch element.
#   x_ref  : (Cx, h*w)        low-res input, channel-major, flattened spatial on lanes
#   s_ref  : (Cs, L)          skip, L = (2h)*(2w)
#   u_ref  : (h*w, L)         bilinear 2x interpolation matrix (kron of 1-D interp matrices)
#   wx_ref : (9*Cout, Cx)     conv taps for the upsampled-x channels, tap-major (dy,dx)
#   ws_ref : (9*Cout, Cs)     conv taps for the skip channels
#   b_ref  : (Cout, 1)
#   m_ref  : (9, 1, L)        per-tap edge-validity masks (implicit zero padding)
#   o_ref  : (Cout, L)        lane-dense output
#   p_scr  : (9*Cout, 2B+L)   VMEM staging buffer for lane-shifted tap reads
# ----------------------------------------------------------------------------
def decoder_kernel(x_ref, s_ref, u_ref, wx_ref, ws_ref, b_ref, m_ref,
                   o_ref, p_scr, *, cout, wd, L, B):
    # 1) Fused bilinear 2x upsample: (Cx, h*w) @ (h*w, L) -> (Cx, L).
    x_up = jnp.dot(x_ref[...], u_ref[...], preferred_element_type=jnp.float32)

    # 2) All 9 conv taps for both branches in two lane-dense matmuls.
    #    Rows [t*Cout:(t+1)*Cout] of p_all hold tap t applied at every spatial position.
    p_all = (jnp.dot(wx_ref[...], x_up, preferred_element_type=jnp.float32)
             + jnp.dot(ws_ref[...], s_ref[...], preferred_element_type=jnp.float32))

    # Stage in VMEM so each tap becomes a cheap static lane-shifted slice read (aligned store).
    p_scr[:, B:B + L] = p_all

    # 3) Combine taps: acc[:, q] = sum_t mask_t[q] * p_all[t*Cout:(t+1)*Cout, q + off_t].
    acc = jnp.zeros((cout, L), jnp.float32)
    for t in range(9):
        dy, dx = t // 3, t % 3
        off = (dy - 1) * wd + (dx - 1)
        shifted = p_scr[t * cout:(t + 1) * cout, B + off:B + off + L]
        # Edge lanes may read unwritten scratch; jnp.where (a select) discards them — no
        # arithmetic touches the masked-off values, so uninitialized data is harmless.
        acc = acc + jnp.where(m_ref[t] > 0.0, shifted, 0.0)

    # 4) Bias + ReLU, stored as one dense (Cout, L) slab (unmasked full-width stores).
    o_ref[...] = jnp.maximum(acc + b_ref[...], 0.0).astype(o_ref.dtype)


# ----------------------------------------------------------------------------
# Wrapper helpers (shape-only constants, computed once).
# ----------------------------------------------------------------------------
def _bilinear_matrix(out_size, in_size):
    """1-D bilinear (scale=2, align_corners=False, PyTorch semantics) matrix (out, in)."""
    i = jnp.arange(out_size, dtype=jnp.float32)
    src = jnp.clip((i + 0.5) / 2.0 - 0.5, 0.0, float(in_size - 1))
    i0 = jnp.floor(src).astype(jnp.int32)
    i1 = jnp.minimum(i0 + 1, in_size - 1)
    w1 = src - i0.astype(jnp.float32)
    w0 = 1.0 - w1
    return (w0[:, None] * jax.nn.one_hot(i0, in_size, dtype=jnp.float32)
            + w1[:, None] * jax.nn.one_hot(i1, in_size, dtype=jnp.float32))


def _tap_weights(w):
    """(Cout, C, 3, 3) -> (9*Cout, C), tap-major in (dy, dx) row-major order."""
    cout, c = w.shape[0], w.shape[1]
    return jnp.transpose(w, (2, 3, 0, 1)).reshape(9 * cout, c)


def _edge_masks(hd, wd):
    """(9, 1, hd*wd) float mask: 1 where the tap's source pixel lies inside the image."""
    oy = jnp.arange(hd)[:, None]
    ox = jnp.arange(wd)[None, :]
    rows = []
    for dy in range(3):
        for dx in range(3):
            iy = oy + (dy - 1)
            ix = ox + (dx - 1)
            ok = (iy >= 0) & (iy < hd) & (ix >= 0) & (ix < wd)
            rows.append(ok.reshape(-1))
    return jnp.stack(rows).astype(jnp.float32).reshape(9, 1, hd * wd)


# ----------------------------------------------------------------------------
# Forward wrapper.  API is NCHW like PyTorch.
# ----------------------------------------------------------------------------
def decoder_forward(x, skip, weight, bias):
    """x: (N, Cx, H, W), skip: (N, Cs, 2H, 2W), weight: (Cout, Cx+Cs, 3, 3), bias: (Cout,)."""
    n, cx, h, w = x.shape
    _, cs, hd, wd = skip.shape
    assert (hd, wd) == (2 * h, 2 * w)
    cout = weight.shape[0]
    L = hd * wd
    hw = h * w
    B = ((wd + 1 + 127) // 128) * 128      # lane offset of the scratch "centre" region

    # Free reshapes: NCHW is already channel-major over a flattened spatial axis.
    x_flat = x.reshape(n, cx, hw)
    s_flat = skip.reshape(n, cs, L)

    # Constants (depend only on shapes / parameters).
    u_k = jnp.kron(_bilinear_matrix(hd, h), _bilinear_matrix(wd, w)).T   # (hw, L)
    wx_k = _tap_weights(weight[:, :cx])                                   # (9*Cout, Cx)
    ws_k = _tap_weights(weight[:, cx:])                                   # (9*Cout, Cs)
    b_k = bias.reshape(cout, 1).astype(jnp.float32)
    m_k = _edge_masks(hd, wd)                                             # (9, 1, L)

    kernel = functools.partial(decoder_kernel, cout=cout, wd=wd, L=L, B=B)

    out_flat = pl.pallas_call(
        kernel,
        out_shape=jax.ShapeDtypeStruct((n, cout, L), x.dtype),
        grid_spec=pltpu.PrefetchScalarGridSpec(
            num_scalar_prefetch=0,
            grid=(n,),
            in_specs=[
                pl.BlockSpec((None, cx, hw), lambda b: (b, 0, 0)),
                pl.BlockSpec((None, cs, L), lambda b: (b, 0, 0)),
                pl.BlockSpec((hw, L), lambda b: (0, 0)),
                pl.BlockSpec((9 * cout, cx), lambda b: (0, 0)),
                pl.BlockSpec((9 * cout, cs), lambda b: (0, 0)),
                pl.BlockSpec((cout, 1), lambda b: (0, 0)),
                pl.BlockSpec((9, 1, L), lambda b: (0, 0, 0)),
            ],
            out_specs=pl.BlockSpec((None, cout, L), lambda b: (b, 0, 0)),
            scratch_shapes=[pltpu.VMEM((9 * cout, 2 * B + L), jnp.float32)],
        ),
        compiler_params=pltpu.CompilerParams(
            dimension_semantics=("parallel",)),
    )(x_flat, s_flat, u_k, wx_k, ws_k, b_k, m_k)

    # TODO(synk): for large H/W add a row-band grid axis (1-row tap halo) so blocks fit v7x's
    # 64 MiB VMEM and shard across its two TensorCores; not needed at these shapes.
    return out_flat.reshape(n, cout, hd, wd)


# ----------------------------------------------------------------------------
# Pure-JAX reference (independent path: gather-based upsample + lax.conv).
# ----------------------------------------------------------------------------
def upsample_bilinear_2x(x):
    n, c, h, w = x.shape

    def coords(out_size, in_size):
        i = jnp.arange(out_size, dtype=jnp.float32)
        src = jnp.clip((i + 0.5) / 2.0 - 0.5, 0.0, float(in_size - 1))
        i0 = jnp.floor(src).astype(jnp.int32)
        i1 = jnp.minimum(i0 + 1, in_size - 1)
        w1 = src - i0.astype(jnp.float32)
        return i0, i1, 1.0 - w1, w1

    h0, h1, wh0, wh1 = coords(2 * h, h)
    w0i, w1i, ww0, ww1 = coords(2 * w, w)
    xh = x[:, :, h0, :] * wh0[:, None] + x[:, :, h1, :] * wh1[:, None]
    return xh[:, :, :, w0i] * ww0 + xh[:, :, :, w1i] * ww1


def decoder_reference(x, skip, weight, bias):
    xc = jnp.concatenate([upsample_bilinear_2x(x), skip], axis=1)
    out = jax.lax.conv_general_dilated(
        xc, weight, window_strides=(1, 1), padding="SAME",
        dimension_numbers=("NCHW", "OIHW", "NCHW"))
    return jnp.maximum(out + bias[None, :, None, None], 0.0)


if __name__ == "__main__":
    # x (2,4,8,8) upsampled to (2,4,16,16); skip (2,4,16,16); Conv2d(8 -> 8, k=3, pad=1).
    key = jax.random.PRNGKey(0)
    kx, ks, kw, kb = jax.random.split(key, 4)

    N, Cx, H, W = 2, 4, 8, 8
    Cs, Cout = 4, 8
    Cin = Cx + Cs

    x = jax.random.normal(kx, (N, Cx, H, W), dtype=jnp.float32)
    skip = jax.random.normal(ks, (N, Cs, 2 * H, 2 * W), dtype=jnp.float32)

    fan_in = Cin * 3 * 3
    bound = 1.0 / (fan_in ** 0.5)
    weight = jax.random.uniform(kw, (Cout, Cin, 3, 3), jnp.float32, -bound, bound)
    bias = jax.random.uniform(kb, (Cout,), jnp.float32, -bound, bound)

    out = jax.jit(decoder_forward)(x, skip, weight, bias)
    out = jax.block_until_ready(out)

    ref = decoder_reference(x, skip, weight, bias)
    assert out.shape == (N, Cout, 2 * H, 2 * W), out.shape
    err = float(jnp.max(jnp.abs(out - ref)))
    assert jnp.allclose(out, ref, atol=1e-4, rtol=1e-4), err

    print("KERNEL_OK")
</pallas_src>

<mosaic_0001>
module attributes {stable_mosaic.version = 11 : i64} {
  func.func @decoder_kernel(%arg0: i32, %arg1: memref<1x4x64xf32, #tpu.memory_space<vmem>>, %arg2: memref<1x4x256xf32, #tpu.memory_space<vmem>>, %arg3: memref<64x256xf32, #tpu.memory_space<vmem>>, %arg4: memref<72x4xf32, #tpu.memory_space<vmem>>, %arg5: memref<72x4xf32, #tpu.memory_space<vmem>>, %arg6: memref<8x1xf32, #tpu.memory_space<vmem>>, %arg7: memref<9x1x256xf32, #tpu.memory_space<vmem>>, %arg8: memref<1x8x256xf32, #tpu.memory_space<vmem>>, %arg9: memref<72x512xf32, #tpu.memory_space<vmem>>) attributes {dimension_semantics = [#tpu.dimension_semantics<parallel>], iteration_bounds = array<i64: 2>, scalar_prefetch = 0 : i64, scratch_operands = 1 : i64, tpu.core_type = #tpu.core_type<tc>, window_params = [{transform_indices = @transform_0, window_bounds = array<i64: 1, 4, 64>}, {transform_indices = @transform_1, window_bounds = array<i64: 1, 4, 256>}, {pipeline_mode = #tpu.pipeline_mode<synchronous>, transform_indices = @transform_2, window_bounds = array<i64: 64, 256>}, {pipeline_mode = #tpu.pipeline_mode<synchronous>, transform_indices = @transform_3, window_bounds = array<i64: 72, 4>}, {pipeline_mode = #tpu.pipeline_mode<synchronous>, transform_indices = @transform_4, window_bounds = array<i64: 72, 4>}, {pipeline_mode = #tpu.pipeline_mode<synchronous>, transform_indices = @transform_5, window_bounds = array<i64: 8, 1>}, {pipeline_mode = #tpu.pipeline_mode<synchronous>, transform_indices = @transform_6, window_bounds = array<i64: 9, 1, 256>}, {transform_indices = @transform_7, window_bounds = array<i64: 1, 8, 256>}]} {
    %c0 = arith.constant 0 : index
    %c0_0 = arith.constant 0 : index
    %c0_1 = arith.constant 0 : index
    %0 = vector.load %arg1[%c0, %c0_0, %c0_1] : memref<1x4x64xf32, #tpu.memory_space<vmem>>, vector<1x4x64xf32>
    %1 = vector.shape_cast %0 : vector<1x4x64xf32> to vector<4x64xf32>
    %c0_2 = arith.constant 0 : index
    %c0_3 = arith.constant 0 : index
    %2 = vector.load %arg3[%c0_2, %c0_3] : memref<64x256xf32, #tpu.memory_space<vmem>>, vector<64x256xf32>
    %cst = arith.constant dense<0.000000e+00> : vector<4x256xf32>
    %3 = tpu.matmul %1, %2, %cst {dimension_numbers = #tpu.dot_dimension_numbers<[1], [0], [0], [1], [0, 0, 1, 1], [], []>} : vector<4x64xf32>, vector<64x256xf32>, vector<4x256xf32> -> vector<4x256xf32>
    %c0_4 = arith.constant 0 : index
    %c0_5 = arith.constant 0 : index
    %4 = vector.load %arg4[%c0_4, %c0_5] : memref<72x4xf32, #tpu.memory_space<vmem>>, vector<72x4xf32>
    %cst_6 = arith.constant dense<0.000000e+00> : vector<72x256xf32>
    %5 = tpu.matmul %4, %3, %cst_6 {dimension_numbers = #tpu.dot_dimension_numbers<[1], [0], [0], [1], [0, 0, 1, 1], [], []>} : vector<72x4xf32>, vector<4x256xf32>, vector<72x256xf32> -> vector<72x256xf32>
    %c0_7 = arith.constant 0 : index
    %c0_8 = arith.constant 0 : index
    %6 = vector.load %arg5[%c0_7, %c0_8] : memref<72x4xf32, #tpu.memory_space<vmem>>, vector<72x4xf32>
    %c0_9 = arith.constant 0 : index
    %c0_10 = arith.constant 0 : index
    %c0_11 = arith.constant 0 : index
    %7 = vector.load %arg2[%c0_9, %c0_10, %c0_11] : memref<1x4x256xf32, #tpu.memory_space<vmem>>, vector<1x4x256xf32>
    %8 = vector.shape_cast %7 : vector<1x4x256xf32> to vector<4x256xf32>
    %cst_12 = arith.constant dense<0.000000e+00> : vector<72x256xf32>
    %9 = tpu.matmul %6, %8, %cst_12 {dimension_numbers = #tpu.dot_dimension_numbers<[1], [0], [0], [1], [0, 0, 1, 1], [], []>} : vector<72x4xf32>, vector<4x256xf32>, vector<72x256xf32> -> vector<72x256xf32>
    %10 = arith.addf %5, %9 : vector<72x256xf32>
    %c0_13 = arith.constant 0 : index
    %c128 = arith.constant 128 : index
    %11 = vector.load %arg9[%c0_13, %c128] : memref<72x512xf32, #tpu.memory_space<vmem>>, vector<72x256xf32>
    tpu.vector_store %arg9[%c0_13, %c128], %10 {strides = array<i32>} : memref<72x512xf32, #tpu.memory_space<vmem>>, vector<72x256xf32>,
    %cst_14 = arith.constant 0.000000e+00 : f32
    %12 = vector.broadcast %cst_14 : f32 to vector<8x256xf32>
    %c0_15 = arith.constant 0 : index
    %c111 = arith.constant 111 : index
    %13 = vector.load %arg9[%c0_15, %c111] : memref<72x512xf32, #tpu.memory_space<vmem>>, vector<8x256xf32>
    %c0_16 = arith.constant 0 : index
    %c0_17 = arith.constant 0 : index
    %c0_18 = arith.constant 0 : index
    %14 = vector.load %arg7[%c0_16, %c0_17, %c0_18] : memref<9x1x256xf32, #tpu.memory_space<vmem>>, vector<1x1x256xf32>
    %15 = vector.shape_cast %14 : vector<1x1x256xf32> to vector<1x256xf32>
    %cst_19 = arith.constant 0.000000e+00 : f32
    %16 = vector.broadcast %cst_19 : f32 to vector<1x256xf32>
    %17 = arith.cmpf ogt, %15, %16 : vector<1x256xf32>
    %cst_20 = arith.constant 0.000000e+00 : f32
    %18 = vector.shape_cast %17 : vector<1x256xi1> to vector<1x256xi1>
    %19 = vector.broadcast %18 : vector<1x256xi1> to vector<8x256xi1>
    %20 = vector.broadcast %cst_20 : f32 to vector<8x256xf32>
    %21 = arith.select %19, %13, %20 : vector<8x256xi1>, vector<8x256xf32>
    %22 = arith.addf %12, %21 : vector<8x256xf32>
    %c8 = arith.constant 8 : index
    %c112 = arith.constant 112 : index
    %23 = vector.load %arg9[%c8, %c112] : memref<72x512xf32, #tpu.memory_space<vmem>>, vector<8x256xf32>
    %c1 = arith.constant 1 : index
    %c0_21 = arith.constant 0 : index
    %c0_22 = arith.constant 0 : index
    %24 = vector.load %arg7[%c1, %c0_21, %c0_22] : memref<9x1x256xf32, #tpu.memory_space<vmem>>, vector<1x1x256xf32>
    %25 = vector.shape_cast %24 : vector<1x1x256xf32> to vector<1x256xf32>
    %cst_23 = arith.constant 0.000000e+00 : f32
    %26 = vector.broadcast %cst_23 : f32 to vector<1x256xf32>
    %27 = arith.cmpf ogt, %25, %26 : vector<1x256xf32>
    %cst_24 = arith.constant 0.000000e+00 : f32
    %28 = vector.shape_cast %27 : vector<1x256xi1> to vector<1x256xi1>
    %29 = vector.broadcast %28 : vector<1x256xi1> to vector<8x256xi1>
    %30 = vector.broadcast %cst_24 : f32 to vector<8x256xf32>
    %31 = arith.select %29, %23, %30 : vector<8x256xi1>, vector<8x256xf32>
    %32 = arith.addf %22, %31 : vector<8x256xf32>
    %c16 = arith.constant 16 : index
    %c113 = arith.constant 113 : index
    %33 = vector.load %arg9[%c16, %c113] : memref<72x512xf32, #tpu.memory_space<vmem>>, vector<8x256xf32>
    %c2 = arith.constant 2 : index
    %c0_25 = arith.constant 0 : index
    %c0_26 = arith.constant 0 : index
    %34 = vector.load %arg7[%c2, %c0_25, %c0_26] : memref<9x1x256xf32, #tpu.memory_space<vmem>>, vector<1x1x256xf32>
    %35 = vector.shape_cast %34 : vector<1x1x256xf32> to vector<1x256xf32>
    %cst_27 = arith.constant 0.000000e+00 : f32
    %36 = vector.broadcast %cst_27 : f32 to vector<1x256xf32>
    %37 = arith.cmpf ogt, %35, %36 : vector<1x256xf32>
    %cst_28 = arith.constant 0.000000e+00 : f32
    %38 = vector.shape_cast %37 : vector<1x256xi1> to vector<1x256xi1>
    %39 = vector.broadcast %38 : vector<1x256xi1> to vector<8x256xi1>
    %40 = vector.broadcast %cst_28 : f32 to vector<8x256xf32>
    %41 = arith.select %39, %33, %40 : vector<8x256xi1>, vector<8x256xf32>
    %42 = arith.addf %32, %41 : vector<8x256xf32>
    %c24 = arith.constant 24 : index
    %c127 = arith.constant 127 : index
    %43 = vector.load %arg9[%c24, %c127] : memref<72x512xf32, #tpu.memory_space<vmem>>, vector<8x256xf32>
    %c3 = arith.constant 3 : index
    %c0_29 = arith.constant 0 : index
    %c0_30 = arith.constant 0 : index
    %44 = vector.load %arg7[%c3, %c0_29, %c0_30] : memref<9x1x256xf32, #tpu.memory_space<vmem>>, vector<1x1x256xf32>
    %45 = vector.shape_cast %44 : vector<1x1x256xf32> to vector<1x256xf32>
    %cst_31 = arith.constant 0.000000e+00 : f32
    %46 = vector.broadcast %cst_31 : f32 to vector<1x256xf32>
    %47 = arith.cmpf ogt, %45, %46 : vector<1x256xf32>
    %cst_32 = arith.constant 0.000000e+00 : f32
    %48 = vector.shape_cast %47 : vector<1x256xi1> to vector<1x256xi1>
    %49 = vector.broadcast %48 : vector<1x256xi1> to vector<8x256xi1>
    %50 = vector.broadcast %cst_32 : f32 to vector<8x256xf32>
    %51 = arith.select %49, %43, %50 : vector<8x256xi1>, vector<8x256xf32>
    %52 = arith.addf %42, %51 : vector<8x256xf32>
    %c32 = arith.constant 32 : index
    %c128_33 = arith.constant 128 : index
    %53 = vector.load %arg9[%c32, %c128_33] : memref<72x512xf32, #tpu.memory_space<vmem>>, vector<8x256xf32>
    %c4 = arith.constant 4 : index
    %c0_34 = arith.constant 0 : index
    %c0_35 = arith.constant 0 : index
    %54 = vector.load %arg7[%c4, %c0_34, %c0_35] : memref<9x1x256xf32, #tpu.memory_space<vmem>>, vector<1x1x256xf32>
    %55 = vector.shape_cast %54 : vector<1x1x256xf32> to vector<1x256xf32>
    %cst_36 = arith.constant 0.000000e+00 : f32
    %56 = vector.broadcast %cst_36 : f32 to vector<1x256xf32>
    %57 = arith.cmpf ogt, %55, %56 : vector<1x256xf32>
    %cst_37 = arith.constant 0.000000e+00 : f32
    %58 = vector.shape_cast %57 : vector<1x256xi1> to vector<1x256xi1>
    %59 = vector.broadcast %58 : vector<1x256xi1> to vector<8x256xi1>
    %60 = vector.broadcast %cst_37 : f32 to vector<8x256xf32>
    %61 = arith.select %59, %53, %60 : vector<8x256xi1>, vector<8x256xf32>
    %62 = arith.addf %52, %61 : vector<8x256xf32>
    %c40 = arith.constant 40 : index
    %c129 = arith.constant 129 : index
    %63 = vector.load %arg9[%c40, %c129] : memref<72x512xf32, #tpu.memory_space<vmem>>, vector<8x256xf32>
    %c5 = arith.constant 5 : index
    %c0_38 = arith.constant 0 : index
    %c0_39 = arith.constant 0 : index
    %64 = vector.load %arg7[%c5, %c0_38, %c0_39] : memref<9x1x256xf32, #tpu.memory_space<vmem>>, vector<1x1x256xf32>
    %65 = vector.shape_cast %64 : vector<1x1x256xf32> to vector<1x256xf32>
    %cst_40 = arith.constant 0.000000e+00 : f32
    %66 = vector.broadcast %cst_40 : f32 to vector<1x256xf32>
    %67 = arith.cmpf ogt, %65, %66 : vector<1x256xf32>
    %cst_41 = arith.constant 0.000000e+00 : f32
    %68 = vector.shape_cast %67 : vector<1x256xi1> to vector<1x256xi1>
    %69 = vector.broadcast %68 : vector<1x256xi1> to vector<8x256xi1>
    %70 = vector.broadcast %cst_41 : f32 to vector<8x256xf32>
    %71 = arith.select %69, %63, %70 : vector<8x256xi1>, vector<8x256xf32>
    %72 = arith.addf %62, %71 : vector<8x256xf32>
    %c48 = arith.constant 48 : index
    %c143 = arith.constant 143 : index
    %73 = vector.load %arg9[%c48, %c143] : memref<72x512xf32, #tpu.memory_space<vmem>>, vector<8x256xf32>
    %c6 = arith.constant 6 : index
    %c0_42 = arith.constant 0 : index
    %c0_43 = arith.constant 0 : index
    %74 = vector.load %arg7[%c6, %c0_42, %c0_43] : memref<9x1x256xf32, #tpu.memory_space<vmem>>, vector<1x1x256xf32>
    %75 = vector.shape_cast %74 : vector<1x1x256xf32> to vector<1x256xf32>
    %cst_44 = arith.constant 0.000000e+00 : f32
    %76 = vector.broadcast %cst_44 : f32 to vector<1x256xf32>
    %77 = arith.cmpf ogt, %75, %76 : vector<1x256xf32>
    %cst_45 = arith.constant 0.000000e+00 : f32
    %78 = vector.shape_cast %77 : vector<1x256xi1> to vector<1x256xi1>
    %79 = vector.broadcast %78 : vector<1x256xi1> to vector<8x256xi1>
    %80 = vector.broadcast %cst_45 : f32 to vector<8x256xf32>
    %81 = arith.select %79, %73, %80 : vector<8x256xi1>, vector<8x256xf32>
    %82 = arith.addf %72, %81 : vector<8x256xf32>
    %c56 = arith.constant 56 : index
    %c144 = arith.constant 144 : index
    %83 = vector.load %arg9[%c56, %c144] : memref<72x512xf32, #tpu.memory_space<vmem>>, vector<8x256xf32>
    %c7 = arith.constant 7 : index
    %c0_46 = arith.constant 0 : index
    %c0_47 = arith.constant 0 : index
    %84 = vector.load %arg7[%c7, %c0_46, %c0_47] : memref<9x1x256xf32, #tpu.memory_space<vmem>>, vector<1x1x256xf32>
    %85 = vector.shape_cast %84 : vector<1x1x256xf32> to vector<1x256xf32>
    %cst_48 = arith.constant 0.000000e+00 : f32
    %86 = vector.broadcast %cst_48 : f32 to vector<1x256xf32>
    %87 = arith.cmpf ogt, %85, %86 : vector<1x256xf32>
    %cst_49 = arith.constant 0.000000e+00 : f32
    %88 = vector.shape_cast %87 : vector<1x256xi1> to vector<1x256xi1>
    %89 = vector.broadcast %88 : vector<1x256xi1> to vector<8x256xi1>
    %90 = vector.broadcast %cst_49 : f32 to vector<8x256xf32>
    %91 = arith.select %89, %83, %90 : vector<8x256xi1>, vector<8x256xf32>
    %92 = arith.addf %82, %91 : vector<8x256xf32>
    %c64 = arith.constant 64 : index
    %c145 = arith.constant 145 : index
    %93 = vector.load %arg9[%c64, %c145] : memref<72x512xf32, #tpu.memory_space<vmem>>, vector<8x256xf32>
    %c8_50 = arith.constant 8 : index
    %c0_51 = arith.constant 0 : index
    %c0_52 = arith.constant 0 : index
    %94 = vector.load %arg7[%c8_50, %c0_51, %c0_52] : memref<9x1x256xf32, #tpu.memory_space<vmem>>, vector<1x1x256xf32>
    %95 = vector.shape_cast %94 : vector<1x1x256xf32> to vector<1x256xf32>
    %cst_53 = arith.constant 0.000000e+00 : f32
    %96 = vector.broadcast %cst_53 : f32 to vector<1x256xf32>
    %97 = arith.cmpf ogt, %95, %96 : vector<1x256xf32>
    %cst_54 = arith.constant 0.000000e+00 : f32
    %98 = vector.shape_cast %97 : vector<1x256xi1> to vector<1x256xi1>
    %99 = vector.broadcast %98 : vector<1x256xi1> to vector<8x256xi1>
    %100 = vector.broadcast %cst_54 : f32 to vector<8x256xf32>
    %101 = arith.select %99, %93, %100 : vector<8x256xi1>, vector<8x256xf32>
    %102 = arith.addf %92, %101 : vector<8x256xf32>
    %c0_55 = arith.constant 0 : index
    %c0_56 = arith.constant 0 : index
    %103 = vector.load %arg6[%c0_55, %c0_56] : memref<8x1xf32, #tpu.memory_space<vmem>>, vector<8x1xf32>
    %104 = vector.broadcast %103 : vector<8x1xf32> to vector<8x256xf32>
    %105 = arith.addf %102, %104 : vector<8x256xf32>
    %cst_57 = arith.constant 0.000000e+00 : f32
    %106 = vector.broadcast %cst_57 : f32 to vector<8x256xf32>
    %107 = arith.maximumf %105, %106 : vector<8x256xf32>
    %c0_58 = arith.constant 0 : index
    %c0_59 = arith.constant 0 : index
    %c0_60 = arith.constant 0 : index
    %108 = vector.load %arg8[%c0_58, %c0_59, %c0_60] : memref<1x8x256xf32, #tpu.memory_space<vmem>>, vector<1x8x256xf32>
    %109 = vector.shape_cast %108 : vector<1x8x256xf32> to vector<8x256xf32>
    %110 = vector.shape_cast %107 : vector<8x256xf32> to vector<1x8x256xf32>
    tpu.vector_store %arg8[%c0_58, %c0_59, %c0_60], %110 {strides = array<i32>} : memref<1x8x256xf32, #tpu.memory_space<vmem>>, vector<1x8x256xf32>,
    return
  }
  func.func @transform_0(%arg0: i32) -> (i32, i32, i32) {
    %c0_i32 = arith.constant 0 : i32
    %c0_i32_0 = arith.constant 0 : i32
    %c0_i32_1 = arith.constant 0 : i32
    return %arg0, %c0_i32, %c0_i32_0 : i32, i32, i32
  }
  func.func @transform_1(%arg0: i32) -> (i32, i32, i32) {
    %c0_i32 = arith.constant 0 : i32
    %c0_i32_0 = arith.constant 0 : i32
    %c0_i32_1 = arith.constant 0 : i32
    return %arg0, %c0_i32, %c0_i32_0 : i32, i32, i32
  }
  func.func @transform_2(%arg0: i32) -> (i32, i32) {
    %c0_i32 = arith.constant 0 : i32
    %c0_i32_0 = arith.constant 0 : i32
    %c0_i32_1 = arith.constant 0 : i32
    return %c0_i32, %c0_i32_0 : i32, i32
  }
  func.func @transform_3(%arg0: i32) -> (i32, i32) {
    %c0_i32 = arith.constant 0 : i32
    %c0_i32_0 = arith.constant 0 : i32
    %c0_i32_1 = arith.constant 0 : i32
    return %c0_i32, %c0_i32_0 : i32, i32
  }
  func.func @transform_4(%arg0: i32) -> (i32, i32) {
    %c0_i32 = arith.constant 0 : i32
    %c0_i32_0 = arith.constant 0 : i32
    %c0_i32_1 = arith.constant 0 : i32
    return %c0_i32, %c0_i32_0 : i32, i32
  }
  func.func @transform_5(%arg0: i32) -> (i32, i32) {
    %c0_i32 = arith.constant 0 : i32
    %c0_i32_0 = arith.constant 0 : i32
    %c0_i32_1 = arith.constant 0 : i32
    return %c0_i32, %c0_i32_0 : i32, i32
  }
  func.func @transform_6(%arg0: i32) -> (i32, i32, i32) {
    %c0_i32 = arith.constant 0 : i32
    %c0_i32_0 = arith.constant 0 : i32
    %c0_i32_1 = arith.constant 0 : i32
    %c0_i32_2 = arith.constant 0 : i32
    return %c0_i32, %c0_i32_0, %c0_i32_1 : i32, i32, i32
  }
  func.func @transform_7(%arg0: i32) -> (i32, i32, i32) {
    %c0_i32 = arith.constant 0 : i32
    %c0_i32_0 = arith.constant 0 : i32
    %c0_i32_1 = arith.constant 0 : i32
    return %arg0, %c0_i32, %c0_i32_0 : i32, i32, i32
  }
}

</mosaic_0001>

<llo_original>
// kernel: decoder_forward.1
$region0: #{decoder_forward.1}
  #allocation0 [shape = 'u32[]', space=smem, size = 0x4, offset = 0x4, fixed_abs, tag = 'smem constant byte address 0x4 - core index']
  #allocation1 [shape = 'u32[144,128]{1,0:T(1,128)}', space=vmem, size = 0x12000, scoped, tag = 'internal scratch']
  #allocation2 [shape = 'f32[72,512]{1,0:T(8,128)}', space=vmem, size = 0x24000, scoped, tag = 'scratch operand']
  %s0 = inlined_call_operand.vmem [shape: f32[2,4,64], index: 0, kind: input, shape index: {}]
  %s1 = inlined_call_operand.vmem [shape: f32[2,4,256], index: 1, kind: input, shape index: {}]
  %s2 = inlined_call_operand.vmem [shape: f32[64,256], index: 2, kind: input, shape index: {}]
  %s3 = inlined_call_operand.vmem [shape: f32[72,4], index: 3, kind: input, shape index: {}]
  %s4 = inlined_call_operand.vmem [shape: f32[72,4], index: 4, kind: input, shape index: {}]
  %s5 = inlined_call_operand.vmem [shape: f32[8,1], index: 5, kind: input, shape index: {}]
  %s6 = inlined_call_operand.vmem [shape: f32[9,1,256], index: 6, kind: input, shape index: {}]
  %s7 = inlined_call_operand.vmem [shape: f32[2,8,256], index: 7, kind: output, shape index: {}]
  %s8 = sld [smem:[#allocation0]]
  $region61: #{decoder_forward.1} parent=0
    _
  %s10 = ssub.s32 1, %s8
  %s11 = scalar_select 0, %s10, %s8
  loop: start=0, step=1, limit=4
  $region2: #{decoder_forward.1} parent=0 // loop_pre_header
    _
  $region3: #{decoder_forward.1} parent=0 // loop_header
    %s13 = sphi 0, %s17
    %p14 = scmp.ge.s32.totalorder %s13, 4
    %s23 = sphi 0, %s25
    %s26 = sphi 0, %s23
    %s27 = sphi 0, %s26
    %s43 = sphi 0, %s27
    %s49 = sphi 0, %s51
    %s52 = sphi 0, %s49
    %s53 = sphi 0, %s52
    %s69 = sphi 0, %s53
    %s73 = sphi 0, %s73
    %s75 = sphi 0, %s73
    %s76 = sphi 0, %s75
    %s90 = sphi 0, %s76
    %s94 = sphi 0, %s94
    %s96 = sphi 0, %s94
    %s97 = sphi 0, %s96
    %s111 = sphi 0, %s97
    %s115 = sphi 0, %s115
    %s117 = sphi 0, %s115
    %s118 = sphi 0, %s117
    %s132 = sphi 0, %s118
    %s136 = sphi 0, %s136
    %s138 = sphi 0, %s136
    %s139 = sphi 0, %s138
    %s153 = sphi 0, %s139
    %s157 = sphi 0, %s157
    %s159 = sphi 0, %s157
    %s160 = sphi 0, %s159
    %s174 = sphi 0, %s160
    %s180 = sphi 0, %s182
    %s183 = sphi 0, %s180
    %s184 = sphi 0, %s183
    %s200 = sphi 0, %s184
  $region4: #{decoder_forward.1} parent=0 // loop_header_branch
    %16 = sbr.rel (%p14) target = $region8
  $region5: #{decoder_forward.1} parent=0 // loop_body
    %s18 = ssub.s32 %s13, 1
    %s19 = ssub.s32 %s13, 2
    %s20 = sadd.s32 %s13, 1
    %s21 = ssub.s32 %s13, %s20
    %p22 = scmp.eq.s32.totalorder %s21, 0
    %s24 = sadd.s32 %s23, 1
    %s25 = scalar_select %p22, %s23, %s24
    %p28 = pneg %p22
    %p29 = scmp.eq.s32.totalorder %s13, 1
    %p30 = por %p28, %p29
    %p31 = scmp.ne.s32.totalorder %s23, %s26
    %p32 = scmp.eq.s32.totalorder %s13, 0
    %p33 = por %p31, %p32
    %p34 = scmp.ne.s32.totalorder %s23, %s26
    %p35 = scmp.eq.s32.totalorder %s18, 1
    %p36 = por %p34, %p35
    %p37 = scmp.ne.s32.totalorder %s26, %s27
    %p38 = scmp.eq.s32.totalorder %s18, 0
    %p39 = por %p37, %p38
    %p40 = scmp.ne.s32.totalorder %s26, %s27
    %p41 = scmp.eq.s32.totalorder %s19, 1
    %p42 = por %p40, %p41
    %p44 = scmp.ne.s32.totalorder %s27, %s43
    %p45 = scmp.eq.s32.totalorder %s19, 0
    %p46 = por %p44, %p45
    %s47 = ssub.s32 %s13, %s20
    %p48 = scmp.eq.s32.totalorder %s47, 0
    %s50 = sadd.s32 %s49, 1
    %s51 = scalar_select %p48, %s49, %s50
    %p54 = pneg %p48
    %p55 = scmp.eq.s32.totalorder %s13, 1
    %p56 = por %p54, %p55
    %p57 = scmp.ne.s32.totalorder %s49, %s52
    %p58 = scmp.eq.s32.totalorder %s13, 0
    %p59 = por %p57, %p58
    %p60 = scmp.ne.s32.totalorder %s49, %s52
    %p61 = scmp.eq.s32.totalorder %s18, 1
    %p62 = por %p60, %p61
    %p63 = scmp.ne.s32.totalorder %s52, %s53
    %p64 = scmp.eq.s32.totalorder %s18, 0
    %p65 = por %p63, %p64
    %p66 = scmp.ne.s32.totalorder %s52, %s53
    %p67 = scmp.eq.s32.totalorder %s19, 1
    %p68 = por %p66, %p67
    %p70 = scmp.ne.s32.totalorder %s53, %s69
    %p71 = scmp.eq.s32.totalorder %s19, 0
    %p72 = por %p70, %p71
    %s74 = sadd.s32 %s73, 1
    %p77 = scmp.eq.s32.totalorder %s13, 1
    %p78 = scmp.ne.s32.totalorder %s73, %s75
    %p79 = scmp.eq.s32.totalorder %s13, 0
    %p80 = por %p78, %p79
    %p81 = scmp.ne.s32.totalorder %s73, %s75
    %p82 = scmp.eq.s32.totalorder %s18, 1
    %p83 = por %p81, %p82
    %p84 = scmp.ne.s32.totalorder %s75, %s76
    %p85 = scmp.eq.s32.totalorder %s18, 0
    %p86 = por %p84, %p85
    %p87 = scmp.ne.s32.totalorder %s75, %s76
    %p88 = scmp.eq.s32.totalorder %s19, 1
    %p89 = por %p87, %p88
    %p91 = scmp.ne.s32.totalorder %s76, %s90
    %p92 = scmp.eq.s32.totalorder %s19, 0
    %p93 = por %p91, %p92
    %s95 = sadd.s32 %s94, 1
    %p98 = scmp.eq.s32.totalorder %s13, 1
    %p99 = scmp.ne.s32.totalorder %s94, %s96
    %p100 = scmp.eq.s32.totalorder %s13, 0
    %p101 = por %p99, %p100
    %p102 = scmp.ne.s32.totalorder %s94, %s96
    %p103 = scmp.eq.s32.totalorder %s18, 1
    %p104 = por %p102, %p103
    %p105 = scmp.ne.s32.totalorder %s96, %s97
    %p106 = scmp.eq.s32.totalorder %s18, 0
    %p107 = por %p105, %p106
    %p108 = scmp.ne.s32.totalorder %s96, %s97
    %p109 = scmp.eq.s32.totalorder %s19, 1
    %p110 = por %p108, %p109
    %p112 = scmp.ne.s32.totalorder %s97, %s111
    %p113 = scmp.eq.s32.totalorder %s19, 0
    %p114 = por %p112, %p113
    %s116 = sadd.s32 %s115, 1
    %p119 = scmp.eq.s32.totalorder %s13, 1
    %p120 = scmp.ne.s32.totalorder %s115, %s117
    %p121 = scmp.eq.s32.totalorder %s13, 0
    %p122 = por %p120, %p121
    %p123 = scmp.ne.s32.totalorder %s115, %s117
    %p124 = scmp.eq.s32.totalorder %s18, 1
    %p125 = por %p123, %p124
    %p126 = scmp.ne.s32.totalorder %s117, %s118
    %p127 = scmp.eq.s32.totalorder %s18, 0
    %p128 = por %p126, %p127
    %p129 = scmp.ne.s32.totalorder %s117, %s118
    %p130 = scmp.eq.s32.totalorder %s19, 1
    %p131 = por %p129, %p130
    %p133 = scmp.ne.s32.totalorder %s118, %s132
    %p134 = scmp.eq.s32.totalorder %s19, 0
    %p135 = por %p133, %p134
    %s137 = sadd.s32 %s136, 1
    %p140 = scmp.eq.s32.totalorder %s13, 1
    %p141 = scmp.ne.s32.totalorder %s136, %s138
    %p142 = scmp.eq.s32.totalorder %s13, 0
    %p143 = por %p141, %p142
    %p144 = scmp.ne.s32.totalorder %s136, %s138
    %p145 = scmp.eq.s32.totalorder %s18, 1
    %p146 = por %p144, %p145
    %p147 = scmp.ne.s32.totalorder %s138, %s139
    %p148 = scmp.eq.s32.totalorder %s18, 0
    %p149 = por %p147, %p148
    %p150 = scmp.ne.s32.totalorder %s138, %s139
    %p151 = scmp.eq.s32.totalorder %s19, 1
    %p152 = por %p150, %p151
    %p154 = scmp.ne.s32.totalorder %s139, %s153
    %p155 = scmp.eq.s32.totalorder %s19, 0
    %p156 = por %p154, %p155
    %s158 = sadd.s32 %s157, 1
    %p161 = scmp.eq.s32.totalorder %s13, 1
    %p162 = scmp.ne.s32.totalorder %s157, %s159
    %p163 = scmp.eq.s32.totalorder %s13, 0
    %p164 = por %p162, %p163
    %p165 = scmp.ne.s32.totalorder %s157, %s159
    %p166 = scmp.eq.s32.totalorder %s18, 1
    %p167 = por %p165, %p166
    %p168 = scmp.ne.s32.totalorder %s159, %s160
    %p169 = scmp.eq.s32.totalorder %s18, 0
    %p170 = por %p168, %p169
    %p171 = scmp.ne.s32.totalorder %s159, %s160
    %p172 = scmp.eq.s32.totalorder %s19, 1
    %p173 = por %p171, %p172
    %p175 = scmp.ne.s32.totalorder %s160, %s174
    %p176 = scmp.eq.s32.totalorder %s19, 0
    %p177 = por %p175, %p176
    %s178 = ssub.s32 %s13, %s20
    %p179 = scmp.eq.s32.totalorder %s178, 0
    %s181 = sadd.s32 %s180, 1
    %s182 = scalar_select %p179, %s180, %s181
    %p185 = pneg %p179
    %p186 = scmp.eq.s32.totalorder %s13, 1
    %p187 = por %p185, %p186
    %p188 = scmp.ne.s32.totalorder %s180, %s183
    %p189 = scmp.eq.s32.totalorder %s13, 0
    %p190 = por %p188, %p189
    %p191 = scmp.ne.s32.totalorder %s180, %s183
    %p192 = scmp.eq.s32.totalorder %s18, 1
    %p193 = por %p191, %p192
    %p194 = scmp.ne.s32.totalorder %s183, %s184
    %p195 = scmp.eq.s32.totalorder %s18, 0
    %p196 = por %p194, %p195
    %p197 = scmp.ne.s32.totalorder %s183, %s184
    %p198 = scmp.eq.s32.totalorder %s19, 1
    %p199 = por %p197, %p198
    %p201 = scmp.ne.s32.totalorder %s184, %s200
    %p202 = scmp.eq.s32.totalorder %s19, 0
    %p203 = por %p201, %p202
    %p204 = scmp.le.s32.totalorder 1, %s13
    %p205 = scmp.lt.s32.totalorder %s13, 3
    %p206 = pnand %p204, %p205
    %p207 = pneg %p206
    // Predicated region
    $region9: #{decoder_forward.1} parent=5 // pred_check
      _
    $region10: #{decoder_forward.1} parent=5 // pred_check_branch
      %209 = sbr.rel (%p206) target = $region12
    $region11: #{decoder_forward.1} parent=5 // pred_region
      %s210 = ssub.s32 %s13, 1
      // Predicated region
      $region13: #{decoder_forward.1} parent=11 // pred_check
        %p211 = pneg %p86
      $region14: #{decoder_forward.1} parent=11 // pred_check_branch
        %213 = sbr.rel (%p211) target = $region16
      $region15: #{decoder_forward.1} parent=11 // pred_region
        _
      $region16: #{decoder_forward.1} parent=11 // pred_fallthru
        _
      // Predicated region
      $region17: #{decoder_forward.1} parent=11 // pred_check
        %p214 = pneg %p107
      $region18: #{decoder_forward.1} parent=11 // pred_check_branch
        %216 = sbr.rel (%p214) target = $region20
      $region19: #{decoder_forward.1} parent=11 // pred_region
        _
      $region20: #{decoder_forward.1} parent=11 // pred_fallthru
        _
      // Predicated region
      $region21: #{decoder_forward.1} parent=11 // pred_check
        %p217 = pneg %p128
      $region22: #{decoder_forward.1} parent=11 // pred_check_branch
        %219 = sbr.rel (%p217) target = $region24
      $region23: #{decoder_forward.1} parent=11 // pred_region
        _
      $region24: #{decoder_forward.1} parent=11 // pred_fallthru
        _
      // Predicated region
      $region25: #{decoder_forward.1} parent=11 // pred_check
        %p220 = pneg %p149
      $region26: #{decoder_forward.1} parent=11 // pred_check_branch
        %222 = sbr.rel (%p220) target = $region28
      $region27: #{decoder_forward.1} parent=11 // pred_region
        _
      $region28: #{decoder_forward.1} parent=11 // pred_fallthru
        _
      // Predicated region
      $region29: #{decoder_forward.1} parent=11 // pred_check
        %p223 = pneg %p170
      $region30: #{decoder_forward.1} parent=11 // pred_check_branch
        %225 = sbr.rel (%p223) target = $region32
      $region31: #{decoder_forward.1} parent=11 // pred_region
        _
      $region32: #{decoder_forward.1} parent=11 // pred_fallthru
        _
    $region12: #{decoder_forward.1} parent=5 // pred_fallthru
      _
    %p226 = scmp.lt.s32.totalorder %s13, 2
    // Predicated region
    $region33: #{decoder_forward.1} parent=5 // pred_check
      %p227 = pneg %p226
    $region34: #{decoder_forward.1} parent=5 // pred_check_branch
      %229 = sbr.rel (%p227) target = $region36
    $region35: #{decoder_forward.1} parent=5 // pred_region
      // Predicated region
      $region37: #{decoder_forward.1} parent=35 // pred_check
        %p230 = pneg %p33
      $region38: #{decoder_forward.1} parent=35 // pred_check_branch
        %232 = sbr.rel (%p230) target = $region40
      $region39: #{decoder_forward.1} parent=35 // pred_region
        %p233 = scmp.lt.s32.totalorder %s13, 1
        %s234 = scalar_select %p233, %s13, 1
        %s235 = smul.addr %s234, 4
        %s236 = scalar_lea.vmem %s0, %s235
      $region40: #{decoder_forward.1} parent=35 // pred_fallthru
        _
      // Predicated region
      $region41: #{decoder_forward.1} parent=35 // pred_check
        %p237 = pneg %p59
      $region42: #{decoder_forward.1} parent=35 // pred_check_branch
        %239 = sbr.rel (%p237) target = $region44
      $region43: #{decoder_forward.1} parent=35 // pred_region
        %p240 = scmp.lt.s32.totalorder %s13, 1
        %s241 = scalar_select %p240, %s13, 1
        %s242 = smul.addr %s241, 2
        %s243 = smul.addr %s242, 4
        %s244 = scalar_lea.vmem %s1, %s243
      $region44: #{decoder_forward.1} parent=35 // pred_fallthru
        _
    $region36: #{decoder_forward.1} parent=5 // pred_fallthru
      _
    %p245 = scmp.le.s32.totalorder 1, %s13
    %p246 = scmp.lt.s32.totalorder %s13, 3
    %p247 = pnand %p245, %p246
    %p248 = pneg %p247
    // Predicated region
    $region45: #{decoder_forward.1} parent=5 // pred_check
      _
    $region46: #{decoder_forward.1} parent=5 // pred_check_branch
      %250 = sbr.rel (%p247) target = $region48
    $region47: #{decoder_forward.1} parent=5 // pred_region
      %s251 = ssub.s32 %s13, 1
      %p252 = scmp.lt.s32.totalorder %s18, 1
      %s253 = scalar_select %p252, %s18, 1
      %s254 = smul.addr %s253, 4
      %s255 = scalar_lea.vmem %s0, %s254
      %p256 = pneg %p39
      %p257 = pneg %p36
      %p258 = scmp.lt.s32.totalorder %s18, 1
      %s259 = scalar_select %p258, %s18, 1
      %s260 = smul.addr %s259, 2
      %s261 = smul.addr %s260, 4
      %s262 = scalar_lea.vmem %s1, %s261
      %p263 = pneg %p65
      %p264 = pneg %p62
      %p265 = pneg %p86
      %p266 = pneg %p83
      %p267 = pneg %p107
      %p268 = pneg %p104
      %p269 = pneg %p128
      %p270 = pneg %p125
      %p271 = pneg %p149
      %p272 = pneg %p146
      %p273 = pneg %p170
      %p274 = pneg %p167
      %p275 = pneg %p196
      %p276 = pneg %p193
      %p277 = scmp.lt.s32.totalorder %s18, 1
      %s278 = scalar_select %p277, %s18, 1
      %s279 = smul.addr %s278, 2
      %s280 = smul.addr %s279, 8
      %s281 = scalar_lea.vmem %s7, %s280
      %p282 = scmp.lt.s32.totalorder %s18, 1
      %s283 = scalar_select %p282, %s18, 1
      %s284 = smul.addr %s283, 4
      %s285 = scalar_lea.vmem %s0, %s284
      %p286 = scmp.lt.s32.totalorder %s18, 1
      %s287 = scalar_select %p286, %s18, 1
      %s288 = smul.addr %s287, 2
      %s289 = smul.addr %s288, 4
      %s290 = scalar_lea.vmem %s1, %s289
      %p291 = scmp.lt.s32.totalorder %s18, 1
      %s292 = scalar_select %p291, %s18, 1
      %s293 = smul.addr %s292, 2
      %s294 = smul.addr %s293, 8
      %s295 = scalar_lea.vmem %s7, %s294
      %v296 = vld [vmem:[%s285] sm:$0xf]
      %v297 = vld [vmem:[%s2] sm:$0xff]
      %v298 = vld [vmem:[%s2 + $0x8] sm:$0xff]
      %v299 = vld [vmem:[%s2 + $0x10] sm:$0xff]
      %v300 = vld [vmem:[%s2 + $0x18] sm:$0xff]
      %v301 = vld [vmem:[%s2 + $0x20] sm:$0xff]
      %v302 = vld [vmem:[%s2 + $0x28] sm:$0xff]
      %v303 = vld [vmem:[%s2 + $0x30] sm:$0xff]
      %v304 = vld [vmem:[%s2 + $0x38] sm:$0xff]
      %v305 = vld [vmem:[%s2 + $0x40] sm:$0xff]
      %v306 = vld [vmem:[%s2 + $0x48] sm:$0xff]
      %v307 = vld [vmem:[%s2 + $0x50] sm:$0xff]
      %v308 = vld [vmem:[%s2 + $0x58] sm:$0xff]
      %v309 = vld [vmem:[%s2 + $0x60] sm:$0xff]
      %v310 = vld [vmem:[%s2 + $0x68] sm:$0xff]
      %v311 = vld [vmem:[%s2 + $0x70] sm:$0xff]
      %v312 = vld [vmem:[%s2 + $0x78] sm:$0xff]
      %vm313 = vcmask 523264
      %v315 = vsel %vm313, %v296, 0
      %317 = vmatprep.subr.mxu0 0.0
      %318 = vmatpush1.msra.mxu0 0.0
      %319 = vmatprep.subr.mxu0 0.0
      %320 = vmatpush1.msra.mxu0 0.0
      %321 = vmatprep.subr.mxu0 0.0
      %322 = vmatpush1.msra.mxu0 0.0
      %323 = vmatprep.subr.mxu0 0.0
      %324 = vmatpush1.msra.mxu0 0.0
      %325 = vmatprep.subr.mxu0 0.0
      %326 = vmatpush1.msra.mxu0 0.0
      %327 = vmatprep.subr.mxu0 0.0
      %328 = vmatpush1.msra.mxu0 0.0
      %329 = vmatprep.subr.mxu0 0.0
      %330 = vmatpush1.msra.mxu0 0.0
      %331 = vmatprep.subr.mxu0 0.0
      %332 = vmatpush1.msra.mxu0 0.0
      %333 = vmatprep.subr.mxu0 %v312
      %334 = vmatpush1.msra.mxu0 %v311
      %335 = vmatprep.subr.mxu0 %v310
      %336 = vmatpush1.msra.mxu0 %v309
      %337 = vmatprep.subr.mxu0 %v308
      %338 = vmatpush1.msra.mxu0 %v307
      %339 = vmatprep.subr.mxu0 %v306
      %340 = vmatpush1.msra.mxu0 %v305
      %341 = vmatprep.subr.mxu0 %v304
      %342 = vmatpush1.msra.mxu0 %v303
      %343 = vmatprep.subr.mxu0 %v302
      %344 = vmatpush1.msra.mxu0 %v301
      %345 = vmatprep.subr.mxu0 %v300
      %346 = vmatpush1.msra.mxu0 %v299
      %347 = vmatprep.subr.mxu0 %v298
      %348 = vmatpush1.msra.mxu0 %v297
      %349 = vmatprep.subr.mxu0 0.0
      %350 = vmatpush2.msra.mxu0 0.0
      %351 = vmatprep.subr.mxu0 0.0
      %352 = vmatpush2.msra.mxu0 0.0
      %353 = vmatprep.subr.mxu0 0.0
      %354 = vmatpush2.msra.mxu0 0.0
      %355 = vmatprep.subr.mxu0 0.0
      %356 = vmatpush2.msra.mxu0 0.0
      %357 = vmatprep.subr.mxu0 0.0
      %358 = vmatpush2.msra.mxu0 0.0
      %359 = vmatprep.subr.mxu0 0.0
      %360 = vmatpush2.msra.mxu0 0.0
      %361 = vmatprep.subr.mxu0 0.0
      %362 = vmatpush2.msra.mxu0 0.0
      %363 = vmatprep.subr.mxu0 0.0
      %364 = vmatpush2.msra.mxu0 0.0
      %365 = vmatprep.subr.mxu0 0.0
      %366 = vmatpush2.msra.mxu0 0.0
      %367 = vmatprep.subr.mxu0 0.0
      %368 = vmatpush2.msra.mxu0 0.0
      %369 = vmatprep.subr.mxu0 0.0
      %370 = vmatpush2.msra.mxu0 0.0
      %371 = vmatprep.subr.mxu0 0.0
      %372 = vmatpush2.msra.mxu0 0.0
      %373 = vmatprep.subr.mxu0 0.0
      %374 = vmatpush2.msra.mxu0 0.0
      %375 = vmatprep.subr.mxu0 0.0
      %376 = vmatpush2.msra.mxu0 0.0
      %377 = vmatprep.subr.mxu0 0.0
      %378 = vmatpush2.msra.mxu0 0.0
      %379 = vmatprep.subr.mxu0 0.0
      %380 = vmatpush2.msra.mxu0 0.0
      %381 = vmatprep.mubr.f32.mxu0 0.0
      %382 = vmatmul.mubr.f32.gmra.mxu0 %v315
      %v383 = vpop.f32.mrf.mxu0
      %v384 = vadd.f32 0.0, %v383
      %v385 = vpop.f32.mrf.mxu0
      %v386 = vadd.f32 0.0, %v385
      %387 = vdwg.mxu0
      %v388 = vld [vmem:[%s3] sm:$0xff]
      %v389 = vld [vmem:[%s3 + $0x8] sm:$0xff]
      %v390 = vld [vmem:[%s3 + $0x10] sm:$0xff]
      %v391 = vld [vmem:[%s3 + $0x18] sm:$0xff]
      %v392 = vld [vmem:[%s3 + $0x20] sm:$0xff]
      %v393 = vld [vmem:[%s3 + $0x28] sm:$0xff]
      %v394 = vld [vmem:[%s3 + $0x30] sm:$0xff]
      %v395 = vld [vmem:[%s3 + $0x38] sm:$0xff]
      %v396 = vld [vmem:[%s3 + $0x40] sm:$0xff]
      %v397 = vld [vmem:[%s4] sm:$0xff]
      %v398 = vld [vmem:[%s4 + $0x8] sm:$0xff]
      %v399 = vld [vmem:[%s4 + $0x10] sm:$0xff]
      %v400 = vld [vmem:[%s4 + $0x18] sm:$0xff]
      %v401 = vld [vmem:[%s4 + $0x20] sm:$0xff]
      %v402 = vld [vmem:[%s4 + $0x28] sm:$0xff]
      %v403 = vld [vmem:[%s4 + $0x30] sm:$0xff]
      %v404 = vld [vmem:[%s4 + $0x38] sm:$0xff]
      %v405 = vld [vmem:[%s4 + $0x40] sm:$0xff]
      %v406 = vld [vmem:[%s290] sm:$0xff]
      %v408 = vcombine.high %v406, %v406
      %vm409 = vcmask 31744
      %v411 = vsel %vm409, %v397, 0
      %v414 = vsel %vm409, %v398, 0
      %v417 = vsel %vm409, %v399, 0
      %v420 = vsel %vm409, %v400, 0
      %v423 = vsel %vm409, %v401, 0
      %v426 = vsel %vm409, %v402, 0
      %v429 = vsel %vm409, %v403, 0
      %v432 = vsel %vm409, %v404, 0
      %v435 = vsel %vm409, %v405, 0
      %vm437 = vcmask 1043456
      %v438 = vsel %vm437, %v406, 0
      %v440 = vsel %vm437, %v408, 0
      %442 = vmatprep.subr.mxu0 0.0
      %443 = vmatpush1.msra.mxu0 0.0
      %444 = vmatprep.subr.mxu0 0.0
      %445 = vmatpush1.msra.mxu0 0.0
      %446 = vmatprep.subr.mxu0 0.0
      %447 = vmatpush1.msra.mxu0 0.0
      %448 = vmatprep.subr.mxu0 0.0
      %449 = vmatpush1.msra.mxu0 0.0
      %450 = vmatprep.subr.mxu0 0.0
      %451 = vmatpush1.msra.mxu0 0.0
      %452 = vmatprep.subr.mxu0 0.0
      %453 = vmatpush1.msra.mxu0 0.0
      %454 = vmatprep.subr.mxu0 0.0
      %455 = vmatpush1.msra.mxu0 0.0
      %456 = vmatprep.subr.mxu0 0.0
      %457 = vmatpush1.msra.mxu0 0.0
      %458 = vmatprep.subr.mxu0 0.0
      %459 = vmatpush1.msra.mxu0 0.0
      %460 = vmatprep.subr.mxu0 0.0
      %461 = vmatpush1.msra.mxu0 0.0
      %462 = vmatprep.subr.mxu0 0.0
      %463 = vmatpush1.msra.mxu0 0.0
      %464 = vmatprep.subr.mxu0 0.0
      %465 = vmatpush1.msra.mxu0 0.0
      %466 = vmatprep.subr.mxu0 0.0
      %467 = vmatpush1.msra.mxu0 0.0
      %468 = vmatprep.subr.mxu0 0.0
      %469 = vmatpush1.msra.mxu0 0.0
      %470 = vmatprep.subr.mxu0 0.0
      %471 = vmatpush1.msra.mxu0 0.0
      %472 = vmatprep.subr.mxu0 %v440
      %473 = vmatpush1.msra.mxu0 %v438
      %474 = vmatprep.subr.mxu0 0.0
      %475 = vmatpush2.msra.mxu0 0.0
      %476 = vmatprep.subr.mxu0 0.0
      %477 = vmatpush2.msra.mxu0 0.0
      %478 = vmatprep.subr.mxu0 0.0
      %479 = vmatpush2.msra.mxu0 0.0
      %480 = vmatprep.subr.mxu0 0.0
      %481 = vmatpush2.msra.mxu0 0.0
      %482 = vmatprep.subr.mxu0 0.0
      %483 = vmatpush2.msra.mxu0 0.0
      %484 = vmatprep.subr.mxu0 0.0
      %485 = vmatpush2.msra.mxu0 0.0
      %486 = vmatprep.subr.mxu0 0.0
      %487 = vmatpush2.msra.mxu0 0.0
      %488 = vmatprep.subr.mxu0 0.0
      %489 = vmatpush2.msra.mxu0 0.0
      %490 = vmatprep.subr.mxu0 0.0
      %491 = vmatpush2.msra.mxu0 0.0
      %492 = vmatprep.subr.mxu0 0.0
      %493 = vmatpush2.msra.mxu0 0.0
      %494 = vmatprep.subr.mxu0 0.0
      %495 = vmatpush2.msra.mxu0 0.0
      %496 = vmatprep.subr.mxu0 0.0
      %497 = vmatpush2.msra.mxu0 0.0
      %498 = vmatprep.subr.mxu0 0.0
      %499 = vmatpush2.msra.mxu0 0.0
      %500 = vmatprep.subr.mxu0 0.0
      %501 = vmatpush2.msra.mxu0 0.0
      %502 = vmatprep.subr.mxu0 0.0
      %503 = vmatpush2.msra.mxu0 0.0
      %504 = vmatprep.subr.mxu0 0.0
      %505 = vmatpush2.msra.mxu0 0.0
      %506 = vmatprep.mubr.f32.mxu0 0.0
      %507 = vmatmul.mubr.f32.gmra.mxu0 %v411
      %v508 = vpop.f32.mrf.mxu0
      %v509 = vadd.f32 0.0, %v508
      %v510 = vpop.f32.mrf.mxu0
      %v511 = vadd.f32 0.0, %v510
      %512 = vmatprep.mubr.f32.mxu0 0.0
      %513 = vmatmul.mubr.f32.gmra.mxu0 %v414
      %v514 = vpop.f32.mrf.mxu0
      %v515 = vadd.f32 0.0, %v514
      %v516 = vpop.f32.mrf.mxu0
      %v517 = vadd.f32 0.0, %v516
      %518 = vmatprep.mubr.f32.mxu0 0.0
      %519 = vmatmul.mubr.f32.gmra.mxu0 %v417
      %v520 = vpop.f32.mrf.mxu0
      %v521 = vadd.f32 0.0, %v520
      %v522 = vpop.f32.mrf.mxu0
      %v523 = vadd.f32 0.0, %v522
      %524 = vmatprep.mubr.f32.mxu0 0.0
      %525 = vmatmul.mubr.f32.gmra.mxu0 %v420
      %v526 = vpop.f32.mrf.mxu0
      %v527 = vadd.f32 0.0, %v526
      %v528 = vpop.f32.mrf.mxu0
      %v529 = vadd.f32 0.0, %v528
      %530 = vmatprep.mubr.f32.mxu0 0.0
      %531 = vmatmul.mubr.f32.gmra.mxu0 %v423
      %v532 = vpop.f32.mrf.mxu0
      %v533 = vadd.f32 0.0, %v532
      %v534 = vpop.f32.mrf.mxu0
      %v535 = vadd.f32 0.0, %v534
      %536 = vmatprep.mubr.f32.mxu0 0.0
      %537 = vmatmul.mubr.f32.gmra.mxu0 %v426
      %v538 = vpop.f32.mrf.mxu0
      %v539 = vadd.f32 0.0, %v538
      %v540 = vpop.f32.mrf.mxu0
      %v541 = vadd.f32 0.0, %v540
      %542 = vmatprep.mubr.f32.mxu0 0.0
      %543 = vmatmul.mubr.f32.gmra.mxu0 %v429
      %v544 = vpop.f32.mrf.mxu0
      %v545 = vadd.f32 0.0, %v544
      %v546 = vpop.f32.mrf.mxu0
      %v547 = vadd.f32 0.0, %v546
      %548 = vmatprep.mubr.f32.mxu0 0.0
      %549 = vmatmul.mubr.f32.gmra.mxu0 %v432
      %v550 = vpop.f32.mrf.mxu0
      %v551 = vadd.f32 0.0, %v550
      %v552 = vpop.f32.mrf.mxu0
      %v553 = vadd.f32 0.0, %v552
      %554 = vmatprep.mubr.f32.mxu0 0.0
      %555 = vmatmul.mubr.f32.gmra.mxu0 %v435
      %v556 = vpop.f32.mrf.mxu0
      %v557 = vadd.f32 0.0, %v556
      %v558 = vpop.f32.mrf.mxu0
      %v559 = vadd.f32 0.0, %v558
      %560 = vdwg.mxu0
      %v562 = vsel %vm409, %v388, 0
      %v565 = vsel %vm409, %v389, 0
      %v568 = vsel %vm409, %v390, 0
      %v571 = vsel %vm409, %v391, 0
      %v574 = vsel %vm409, %v392, 0
      %v577 = vsel %vm409, %v393, 0
      %v580 = vsel %vm409, %v394, 0
      %v583 = vsel %vm409, %v395, 0
      %v586 = vsel %vm409, %v396, 0
      %v589 = vsel %vm437, %v384, 0
      %v592 = vsel %vm437, %v386, 0
      %594 = vmatprep.subr.mxu0 0.0
      %595 = vmatpush1.msra.mxu0 0.0
      %596 = vmatprep.subr.mxu0 0.0
      %597 = vmatpush1.msra.mxu0 0.0
      %598 = vmatprep.subr.mxu0 0.0
      %599 = vmatpush1.msra.mxu0 0.0
      %600 = vmatprep.subr.mxu0 0.0
      %601 = vmatpush1.msra.mxu0 0.0
      %602 = vmatprep.subr.mxu0 0.0
      %603 = vmatpush1.msra.mxu0 0.0
      %604 = vmatprep.subr.mxu0 0.0
      %605 = vmatpush1.msra.mxu0 0.0
      %606 = vmatprep.subr.mxu0 0.0
      %607 = vmatpush1.msra.mxu0 0.0
      %608 = vmatprep.subr.mxu0 0.0
      %609 = vmatpush1.msra.mxu0 0.0
      %610 = vmatprep.subr.mxu0 0.0
      %611 = vmatpush1.msra.mxu0 0.0
      %612 = vmatprep.subr.mxu0 0.0
      %613 = vmatpush1.msra.mxu0 0.0
      %614 = vmatprep.subr.mxu0 0.0
      %615 = vmatpush1.msra.mxu0 0.0
      %616 = vmatprep.subr.mxu0 0.0
      %617 = vmatpush1.msra.mxu0 0.0
      %618 = vmatprep.subr.mxu0 0.0
      %619 = vmatpush1.msra.mxu0 0.0
      %620 = vmatprep.subr.mxu0 0.0
      %621 = vmatpush1.msra.mxu0 0.0
      %622 = vmatprep.subr.mxu0 0.0
      %623 = vmatpush1.msra.mxu0 0.0
      %624 = vmatprep.subr.mxu0 %v592
      %625 = vmatpush1.msra.mxu0 %v589
      %626 = vmatprep.subr.mxu0 0.0
      %627 = vmatpush2.msra.mxu0 0.0
      %628 = vmatprep.subr.mxu0 0.0
      %629 = vmatpush2.msra.mxu0 0.0
      %630 = vmatprep.subr.mxu0 0.0
      %631 = vmatpush2.msra.mxu0 0.0
      %632 = vmatprep.subr.mxu0 0.0
      %633 = vmatpush2.msra.mxu0 0.0
      %634 = vmatprep.subr.mxu0 0.0
      %635 = vmatpush2.msra.mxu0 0.0
      %636 = vmatprep.subr.mxu0 0.0
      %637 = vmatpush2.msra.mxu0 0.0
      %638 = vmatprep.subr.mxu0 0.0
      %639 = vmatpush2.msra.mxu0 0.0
      %640 = vmatprep.subr.mxu0 0.0
      %641 = vmatpush2.msra.mxu0 0.0
      %642 = vmatprep.subr.mxu0 0.0
      %643 = vmatpush2.msra.mxu0 0.0
      %644 = vmatprep.subr.mxu0 0.0
      %645 = vmatpush2.msra.mxu0 0.0
      %646 = vmatprep.subr.mxu0 0.0
      %647 = vmatpush2.msra.mxu0 0.0
      %648 = vmatprep.subr.mxu0 0.0
      %649 = vmatpush2.msra.mxu0 0.0
      %650 = vmatprep.subr.mxu0 0.0
      %651 = vmatpush2.msra.mxu0 0.0
      %652 = vmatprep.subr.mxu0 0.0
      %653 = vmatpush2.msra.mxu0 0.0
      %654 = vmatprep.subr.mxu0 0.0
      %655 = vmatpush2.msra.mxu0 0.0
      %656 = vmatprep.subr.mxu0 0.0
      %657 = vmatpush2.msra.mxu0 0.0
      %658 = vmatprep.mubr.f32.mxu0 0.0
      %659 = vmatmul.mubr.f32.gmra.mxu0 %v562
      %v660 = vpop.f32.mrf.mxu0
      %v661 = vadd.f32 %v509, %v660
      %v662 = vpop.f32.mrf.mxu0
      %v663 = vadd.f32 %v511, %v662
      %664 = vmatprep.mubr.f32.mxu0 0.0
      %665 = vmatmul.mubr.f32.gmra.mxu0 %v565
      %v666 = vpop.f32.mrf.mxu0
      %v667 = vadd.f32 %v515, %v666
      %v668 = vpop.f32.mrf.mxu0
      %v669 = vadd.f32 %v517, %v668
      %670 = vmatprep.mubr.f32.mxu0 0.0
      %671 = vmatmul.mubr.f32.gmra.mxu0 %v568
      %v672 = vpop.f32.mrf.mxu0
      %v673 = vadd.f32 %v521, %v672
      %v674 = vpop.f32.mrf.mxu0
      %v675 = vadd.f32 %v523, %v674
      %676 = vmatprep.mubr.f32.mxu0 0.0
      %677 = vmatmul.mubr.f32.gmra.mxu0 %v571
      %v678 = vpop.f32.mrf.mxu0
      %v679 = vadd.f32 %v527, %v678
      %v680 = vpop.f32.mrf.mxu0
      %v681 = vadd.f32 %v529, %v680
      %682 = vmatprep.mubr.f32.mxu0 0.0
      %683 = vmatmul.mubr.f32.gmra.mxu0 %v574
      %v684 = vpop.f32.mrf.mxu0
      %v685 = vadd.f32 %v533, %v684
      %v686 = vpop.f32.mrf.mxu0
      %v687 = vadd.f32 %v535, %v686
      %688 = vmatprep.mubr.f32.mxu0 0.0
      %689 = vmatmul.mubr.f32.gmra.mxu0 %v577
      %v690 = vpop.f32.mrf.mxu0
      %v691 = vadd.f32 %v539, %v690
      %v692 = vpop.f32.mrf.mxu0
      %v693 = vadd.f32 %v541, %v692
      %694 = vmatprep.mubr.f32.mxu0 0.0
      %695 = vmatmul.mubr.f32.gmra.mxu0 %v580
      %v696 = vpop.f32.mrf.mxu0
      %v697 = vadd.f32 %v545, %v696
      %v698 = vpop.f32.mrf.mxu0
      %v699 = vadd.f32 %v547, %v698
      %700 = vmatprep.mubr.f32.mxu0 0.0
      %701 = vmatmul.mubr.f32.gmra.mxu0 %v583
      %v702 = vpop.f32.mrf.mxu0
      %v703 = vadd.f32 %v551, %v702
      %v704 = vpop.f32.mrf.mxu0
      %v705 = vadd.f32 %v553, %v704
      %706 = vmatprep.mubr.f32.mxu0 0.0
      %707 = vmatmul.mubr.f32.gmra.mxu0 %v586
      %v708 = vpop.f32.mrf.mxu0
      %v709 = vadd.f32 %v557, %v708
      %v710 = vpop.f32.mrf.mxu0
      %v711 = vadd.f32 %v559, %v710
      %712 = vdwg.mxu0
      %713 = vst [vmem:[#allocation2 + $0x8] sm:$0xff] %v661
      %714 = vst [vmem:[#allocation2 + $0x10] sm:$0xff] %v663
      %715 = vst [vmem:[#allocation2 + $0x28] sm:$0xff] %v667
      %716 = vst [vmem:[#allocation2 + $0x30] sm:$0xff] %v669
      %717 = vst [vmem:[#allocation2 + $0x48] sm:$0xff] %v673
      %718 = vst [vmem:[#allocation2 + $0x50] sm:$0xff] %v675
      %719 = vst [vmem:[#allocation2 + $0x68] sm:$0xff] %v679
      %720 = vst [vmem:[#allocation2 + $0x70] sm:$0xff] %v681
      %721 = vst [vmem:[#allocation2 + $0x88] sm:$0xff] %v685
      %722 = vst [vmem:[#allocation2 + $0x90] sm:$0xff] %v687
      %723 = vst [vmem:[#allocation2 + $0xa8] sm:$0xff] %v691
      %724 = vst [vmem:[#allocation2 + $0xb0] sm:$0xff] %v693
      %725 = vst [vmem:[#allocation2 + $0xc8] sm:$0xff] %v697
      %726 = vst [vmem:[#allocation2 + $0xd0] sm:$0xff] %v699
      %727 = vst [vmem:[#allocation2 + $0xe8] sm:$0xff] %v703
      %728 = vst [vmem:[#allocation2 + $0xf0] sm:$0xff] %v705
      %729 = vst [vmem:[#allocation2 + $0x108] sm:$0xff] %v709
      %730 = vst [vmem:[#allocation2 + $0x110] sm:$0xff] %v711
      %v731 = vld [vmem:[#allocation2] sm:$0xff]
      %v732 = vld [vmem:[#allocation2 + $0x8] sm:$0xff]
      %v733 = vld [vmem:[#allocation2 + $0x10] sm:$0xff]
      %v734 = vld [vmem:[%s6] sm:$0x3]
      %vm735 = vcmp.gt.f32.partialorder %v734, 0.0
      %v736 = vsel %vm735, 1, 0
      %v737 = vlaneseq
      %v738 = vshrl.u32 %v737, 7
      %v739 = vsub.s32 0, %v738
      %v740 = vrot.slane %v736, %v739
      %v741 = vlaneseq
      %v742 = vshrl.u32 %v741, 7
      %v743 = vsub.s32 1, %v742
      %v744 = vrot.slane %v736, %v743
      %vm745 = vcmp.eq.s32.totalorder %v740, 1
      %vm746 = vcmp.eq.s32.totalorder %v744, 1
      %750 = vrot.lane.b32.xlu0 %v731, 17
      %v751 = vpop.permute.xlu0 %750
      %752 = vrot.lane.b32.xlu0 %v732, 17
      %v753 = vpop.permute.xlu0 %752
      %754 = vrot.lane.b32.xlu0 %v733, 17
      %v755 = vpop.permute.xlu0 %754
      %vm756 = vcmask 138240
      %v757 = vsel %vm756, %v751, %v753
      %v758 = vsel %vm756, %v753, %v755
      %v761 = vsel %vm745, %v757, 0.0
      %v762 = vsel %vm746, %v758, 0.0
      %v763 = vadd.f32 %v761, 0.0
      %v764 = vadd.f32 %v762, 0.0
      %v765 = vld [vmem:[#allocation2 + $0x20] sm:$0xff]
      %v766 = vld [vmem:[#allocation2 + $0x28] sm:$0xff]
      %v767 = vld [vmem:[#allocation2 + $0x30] sm:$0xff]
      %s768 = scalar_lea.vmem %s6, 2
      %v769 = vld [vmem:[%s768] sm:$0x3]
      %vm770 = vcmp.gt.f32.partialorder %v769, 0.0
      %v771 = vsel %vm770, 1, 0
      %v772 = vlaneseq
      %v773 = vshrl.u32 %v772, 7
      %v774 = vsub.s32 0, %v773
      %v775 = vrot.slane %v771, %v774
      %v776 = vlaneseq
      %v777 = vshrl.u32 %v776, 7
      %v778 = vsub.s32 1, %v777
      %v779 = vrot.slane %v771, %v778
      %vm780 = vcmp.eq.s32.totalorder %v775, 1
      %vm781 = vcmp.eq.s32.totalorder %v779, 1
      %785 = vrot.lane.b32.xlu0 %v765, 16
      %v786 = vpop.permute.xlu0 %785
      %787 = vrot.lane.b32.xlu0 %v766, 16
      %v788 = vpop.permute.xlu0 %787
      %789 = vrot.lane.b32.xlu0 %v767, 16
      %v790 = vpop.permute.xlu0 %789
      %vm791 = vcmask 130048
      %v792 = vsel %vm791, %v786, %v788
      %v793 = vsel %vm791, %v788, %v790
      %v796 = vsel %vm780, %v792, 0.0
      %v797 = vsel %vm781, %v793, 0.0
      %v798 = vadd.f32 %v763, %v796
      %v799 = vadd.f32 %v764, %v797
      %v800 = vld [vmem:[#allocation2 + $0x40] sm:$0xff]
      %v801 = vld [vmem:[#allocation2 + $0x48] sm:$0xff]
      %v802 = vld [vmem:[#allocation2 + $0x50] sm:$0xff]
      %s803 = scalar_lea.vmem %s6, 4
      %v804 = vld [vmem:[%s803] sm:$0x3]
      %vm805 = vcmp.gt.f32.partialorder %v804, 0.0
      %v806 = vsel %vm805, 1, 0
      %v807 = vlaneseq
      %v808 = vshrl.u32 %v807, 7
      %v809 = vsub.s32 0, %v808
      %v810 = vrot.slane %v806, %v809
      %v811 = vlaneseq
      %v812 = vshrl.u32 %v811, 7
      %v813 = vsub.s32 1, %v812
      %v814 = vrot.slane %v806, %v813
      %vm815 = vcmp.eq.s32.totalorder %v810, 1
      %vm816 = vcmp.eq.s32.totalorder %v814, 1
      %820 = vrot.lane.b32.xlu0 %v800, 15
      %v821 = vpop.permute.xlu0 %820
      %822 = vrot.lane.b32.xlu0 %v801, 15
      %v823 = vpop.permute.xlu0 %822
      %824 = vrot.lane.b32.xlu0 %v802, 15
      %v825 = vpop.permute.xlu0 %824
      %vm826 = vcmask 121856
      %v827 = vsel %vm826, %v821, %v823
      %v828 = vsel %vm826, %v823, %v825
      %v831 = vsel %vm815, %v827, 0.0
      %v832 = vsel %vm816, %v828, 0.0
      %v833 = vadd.f32 %v798, %v831
      %v834 = vadd.f32 %v799, %v832
      %v835 = vld [vmem:[#allocation2 + $0x60] sm:$0xff]
      %v836 = vld [vmem:[#allocation2 + $0x68] sm:$0xff]
      %v837 = vld [vmem:[#allocation2 + $0x70] sm:$0xff]
      %s838 = scalar_lea.vmem %s6, 6
      %v839 = vld [vmem:[%s838] sm:$0x3]
      %vm840 = vcmp.gt.f32.partialorder %v839, 0.0
      %v841 = vsel %vm840, 1, 0
      %v842 = vlaneseq
      %v843 = vshrl.u32 %v842, 7
      %v844 = vsub.s32 0, %v843
      %v845 = vrot.slane %v841, %v844
      %v846 = vlaneseq
      %v847 = vshrl.u32 %v846, 7
      %v848 = vsub.s32 1, %v847
      %v849 = vrot.slane %v841, %v848
      %vm850 = vcmp.eq.s32.totalorder %v845, 1
      %vm851 = vcmp.eq.s32.totalorder %v849, 1
      %855 = vrot.lane.b32.xlu0 %v835, 1
      %v856 = vpop.permute.xlu0 %855
      %857 = vrot.lane.b32.xlu0 %v836, 1
      %v858 = vpop.permute.xlu0 %857
      %859 = vrot.lane.b32.xlu0 %v837, 1
      %v860 = vpop.permute.xlu0 %859
      %vm861 = vcmask 7168
      %v862 = vsel %vm861, %v856, %v858
      %v863 = vsel %vm861, %v858, %v860
      %v866 = vsel %vm850, %v862, 0.0
      %v867 = vsel %vm851, %v863, 0.0
      %v868 = vadd.f32 %v833, %v866
      %v869 = vadd.f32 %v834, %v867
      %v870 = vld [vmem:[#allocation2 + $0x88] sm:$0xff]
      %v871 = vld [vmem:[#allocation2 + $0x90] sm:$0xff]
      %s872 = scalar_lea.vmem %s6, 8
      %v873 = vld [vmem:[%s872] sm:$0x3]
      %vm874 = vcmp.gt.f32.partialorder %v873, 0.0
      %v875 = vsel %vm874, 1, 0
      %v876 = vlaneseq
      %v877 = vshrl.u32 %v876, 7
      %v878 = vsub.s32 0, %v877
      %v879 = vrot.slane %v875, %v878
      %v880 = vlaneseq
      %v881 = vshrl.u32 %v880, 7
      %v882 = vsub.s32 1, %v881
      %v883 = vrot.slane %v875, %v882
      %vm884 = vcmp.eq.s32.totalorder %v879, 1
      %vm885 = vcmp.eq.s32.totalorder %v883, 1
      %v886 = vsel %vm884, %v870, 0.0
      %v887 = vsel %vm885, %v871, 0.0
      %v888 = vadd.f32 %v868, %v886
      %v889 = vadd.f32 %v869, %v887
      %v890 = vld [vmem:[#allocation2 + $0xa8] sm:$0xff]
      %v891 = vld [vmem:[#allocation2 + $0xb0] sm:$0xff]
      %v892 = vld [vmem:[#allocation2 + $0xb8] sm:$0xff]
      %s893 = scalar_lea.vmem %s6, 10
      %v894 = vld [vmem:[%s893] sm:$0x3]
      %vm895 = vcmp.gt.f32.partialorder %v894, 0.0
      %v896 = vsel %vm895, 1, 0
      %v897 = vlaneseq
      %v898 = vshrl.u32 %v897, 7
      %v899 = vsub.s32 0, %v898
      %v900 = vrot.slane %v896, %v899
      %v901 = vlaneseq
      %v902 = vshrl.u32 %v901, 7
      %v903 = vsub.s32 1, %v902
      %v904 = vrot.slane %v896, %v903
      %vm905 = vcmp.eq.s32.totalorder %v900, 1
      %vm906 = vcmp.eq.s32.totalorder %v904, 1
      %910 = vrot.lane.b32.xlu0 %v890, 127
      %v911 = vpop.permute.xlu0 %910
      %912 = vrot.lane.b32.xlu0 %v891, 127
      %v913 = vpop.permute.xlu0 %912
      %914 = vrot.lane.b32.xlu0 %v892, 127
      %v915 = vpop.permute.xlu0 %914
      %vm916 = vcmask 1039360
      %v917 = vsel %vm916, %v911, %v913
      %v918 = vsel %vm916, %v913, %v915
      %v921 = vsel %vm905, %v917, 0.0
      %v922 = vsel %vm906, %v918, 0.0
      %v923 = vadd.f32 %v888, %v921
      %v924 = vadd.f32 %v889, %v922
      %v925 = vld [vmem:[#allocation2 + $0xc8] sm:$0xff]
      %v926 = vld [vmem:[#allocation2 + $0xd0] sm:$0xff]
      %v927 = vld [vmem:[#allocation2 + $0xd8] sm:$0xff]
      %s928 = scalar_lea.vmem %s6, 12
      %v929 = vld [vmem:[%s928] sm:$0x3]
      %vm930 = vcmp.gt.f32.partialorder %v929, 0.0
      %v931 = vsel %vm930, 1, 0
      %v932 = vlaneseq
      %v933 = vshrl.u32 %v932, 7
      %v934 = vsub.s32 0, %v933
      %v935 = vrot.slane %v931, %v934
      %v936 = vlaneseq
      %v937 = vshrl.u32 %v936, 7
      %v938 = vsub.s32 1, %v937
      %v939 = vrot.slane %v931, %v938
      %vm940 = vcmp.eq.s32.totalorder %v935, 1
      %vm941 = vcmp.eq.s32.totalorder %v939, 1
      %945 = vrot.lane.b32.xlu0 %v925, 113
      %v946 = vpop.permute.xlu0 %945
      %947 = vrot.lane.b32.xlu0 %v926, 113
      %v948 = vpop.permute.xlu0 %947
      %949 = vrot.lane.b32.xlu0 %v927, 113
      %v950 = vpop.permute.xlu0 %949
      %vm951 = vcmask 924672
      %v952 = vsel %vm951, %v946, %v948
      %v953 = vsel %vm951, %v948, %v950
      %v956 = vsel %vm940, %v952, 0.0
      %v957 = vsel %vm941, %v953, 0.0
      %v958 = vadd.f32 %v923, %v956
      %v959 = vadd.f32 %v924, %v957
      %v960 = vld [vmem:[#allocation2 + $0xe8] sm:$0xff]
      %v961 = vld [vmem:[#allocation2 + $0xf0] sm:$0xff]
      %v962 = vld [vmem:[#allocation2 + $0xf8] sm:$0xff]
      %s963 = scalar_lea.vmem %s6, 14
      %v964 = vld [vmem:[%s963] sm:$0x3]
      %vm965 = vcmp.gt.f32.partialorder %v964, 0.0
      %v966 = vsel %vm965, 1, 0
      %v967 = vlaneseq
      %v968 = vshrl.u32 %v967, 7
      %v969 = vsub.s32 0, %v968
      %v970 = vrot.slane %v966, %v969
      %v971 = vlaneseq
      %v972 = vshrl.u32 %v971, 7
      %v973 = vsub.s32 1, %v972
      %v974 = vrot.slane %v966, %v973
      %vm975 = vcmp.eq.s32.totalorder %v970, 1
      %vm976 = vcmp.eq.s32.totalorder %v974, 1
      %980 = vrot.lane.b32.xlu0 %v960, 112
      %v981 = vpop.permute.xlu0 %980
      %982 = vrot.lane.b32.xlu0 %v961, 112
      %v983 = vpop.permute.xlu0 %982
      %984 = vrot.lane.b32.xlu0 %v962, 112
      %v985 = vpop.permute.xlu0 %984
      %vm986 = vcmask 916480
      %v987 = vsel %vm986, %v981, %v983
      %v988 = vsel %vm986, %v983, %v985
      %v991 = vsel %vm975, %v987, 0.0
      %v992 = vsel %vm976, %v988, 0.0
      %v993 = vadd.f32 %v958, %v991
      %v994 = vadd.f32 %v959, %v992
      %v995 = vld [vmem:[#allocation2 + $0x108] sm:$0xff]
      %v996 = vld [vmem:[#allocation2 + $0x110] sm:$0xff]
      %v997 = vld [vmem:[#allocation2 + $0x118] sm:$0xff]
      %s998 = scalar_lea.vmem %s6, 16
      %v999 = vld [vmem:[%s998] sm:$0x3]
      %vm1000 = vcmp.gt.f32.partialorder %v999, 0.0
      %v1001 = vsel %vm1000, 1, 0
      %v1002 = vlaneseq
      %v1003 = vshrl.u32 %v1002, 7
      %v1004 = vsub.s32 0, %v1003
      %v1005 = vrot.slane %v1001, %v1004
      %v1006 = vlaneseq
      %v1007 = vshrl.u32 %v1006, 7
      %v1008 = vsub.s32 1, %v1007
      %v1009 = vrot.slane %v1001, %v1008
      %vm1010 = vcmp.eq.s32.totalorder %v1005, 1
      %vm1011 = vcmp.eq.s32.totalorder %v1009, 1
      %1015 = vrot.lane.b32.xlu0 %v995, 111
      %v1016 = vpop.permute.xlu0 %1015
      %1017 = vrot.lane.b32.xlu0 %v996, 111
      %v1018 = vpop.permute.xlu0 %1017
      %1019 = vrot.lane.b32.xlu0 %v997, 111
      %v1020 = vpop.permute.xlu0 %1019
      %vm1021 = vcmask 908288
      %v1022 = vsel %vm1021, %v1016, %v1018
      %v1023 = vsel %vm1021, %v1018, %v1020
      %v1026 = vsel %vm1010, %v1022, 0.0
      %v1027 = vsel %vm1011, %v1023, 0.0
      %v1028 = vadd.f32 %v993, %v1026
      %v1029 = vadd.f32 %v994, %v1027
      %v1030 = vld [vmem:[%s5] sm:$0xff]
      %1032 = vset.pattern.permute.xlu0 0
      %1033 = vperm.xlu0 %1032, %v1030
      %v1034 = vpop.permute.xlu0 %1033
      %v1036 = vadd.f32 %v1028, %v1034
      %v1037 = vadd.f32 %v1029, %v1034
      %v1038 = vmax.f32 %v1036, 0.0
      %v1039 = vmax.f32 %v1037, 0.0
      %1040 = vst [vmem:[%s295] sm:$0xff] %v1038
      %1041 = vst [vmem:[%s295 + $0x8] sm:$0xff] %v1039
      %p1042 = scmp.lt.s32.totalorder %s18, 1
      %s1043 = scalar_select %p1042, %s18, 1
      %s1044 = smul.addr %s1043, 2
      %s1045 = smul.addr %s1044, 8
      %s1046 = scalar_lea.vmem %s7, %s1045
      // Predicated region
      $region49: #{decoder_forward.1} parent=47 // pred_check
        %p1047 = pneg %p193
      $region50: #{decoder_forward.1} parent=47 // pred_check_branch
        %1049 = sbr.rel (%p1047) target = $region52
      $region51: #{decoder_forward.1} parent=47 // pred_region
        _
      $region52: #{decoder_forward.1} parent=47 // pred_fallthru
        _
    $region48: #{decoder_forward.1} parent=5 // pred_fallthru
      _
    %p1050 = scmp.le.s32.totalorder 2, %s13
    // Predicated region
    $region53: #{decoder_forward.1} parent=5 // pred_check
      %p1051 = pneg %p1050
    $region54: #{decoder_forward.1} parent=5 // pred_check_branch
      %1053 = sbr.rel (%p1051) target = $region56
    $region55: #{decoder_forward.1} parent=5 // pred_region
      %s1054 = ssub.s32 %s13, 2
      // Predicated region
      $region57: #{decoder_forward.1} parent=55 // pred_check
        %p1055 = pneg %p199
      $region58: #{decoder_forward.1} parent=55 // pred_check_branch
        %1057 = sbr.rel (%p1055) target = $region60
      $region59: #{decoder_forward.1} parent=55 // pred_region
        %p1058 = scmp.lt.s32.totalorder %s19, 1
        %s1059 = scalar_select %p1058, %s19, 1
        %s1060 = smul.addr %s1059, 2
        %s1061 = smul.addr %s1060, 8
        %s1062 = scalar_lea.vmem %s7, %s1061
      $region60: #{decoder_forward.1} parent=55 // pred_fallthru
        _
    $region56: #{decoder_forward.1} parent=5 // pred_fallthru
      _
  $region6: #{decoder_forward.1} parent=0 // loop_footer
    %s17 = sadd.s32 1, %s13
  $region7: #{decoder_forward.1} parent=0 // loop_footer_branch
    %12 = sbr.rel target = $region3
  $region8: #{decoder_forward.1} parent=0 // loop_exit
    _

</llo_original>
